<compile_context>
chip_gen: v7x
topology: tpu7x:2x2x1
jax: 0.10.0
libtpu: 0.0.40
codegen_flags: <defaults>
</compile_context>

<pallas_src>
import functools
import math

import jax
import jax.numpy as jnp
from jax.experimental import pallas as pl
from jax.experimental.pallas import tpu as pltpu

_NEG_INF = -1e9          # matches torch masked_fill(mask == 0, -1e9)
_MIB = 1024 * 1024


def _round_up(x, m):
    return ((x + m - 1) // m) * m


def _sublane(dtype):
    # sublane multiple for the dtype: 8 (f32), 16 (bf16), 32 (int8)
    return max(8, 32 // jnp.dtype(dtype).itemsize)


@functools.lru_cache(maxsize=1)
def _vmem_capacity_bytes():
    try:
        info = pltpu.get_tpu_info()
        return int(getattr(info, "vmem_capacity_bytes", 128 * _MIB))
    except Exception:        # not on TPU / old jax: conservative (v7x-sized)
        return 64 * _MIB


def _vmem_limit_bytes():
    # 13/16 of physical VMEM: ~52 MiB on v7x (64 MiB), ~104 MiB on v5e/v6e.
    return max((_vmem_capacity_bytes() * 13) // 16, 32 * _MIB)


def _default_tile():
    # Generation-specific tiling: 512 row/query tiles on 128 MiB VMEM parts
    # (v5e/v6e), 256 on v7x (64 MiB).
    return 512 if _vmem_capacity_bytes() >= 100 * _MIB else 256


# ----------------------------- Linear kernel --------------------------------

def _linear_kernel(x_ref, w_ref, b_ref, o_ref):
    y = jnp.dot(x_ref[...], w_ref[...], preferred_element_type=jnp.float32)
    y = y + b_ref[...].astype(jnp.float32)
    o_ref[...] = y.astype(o_ref.dtype)


def _single_buffered_spec(shape, index_map):
    """BlockSpec single-buffered when supported (its block index never changes)."""
    buffered = getattr(pl, "Buffered", None)
    if buffered is not None:
        try:
            return pl.BlockSpec(shape, index_map, pipeline_mode=buffered(1))
        except TypeError:
            pass
    return pl.BlockSpec(shape, index_map)


def _linear(x2d, w, b, *, tile_m=None):
    """y = x2d @ w + b ; x2d:(M,Din), w:(Din,Dout) pre-transposed, b:(Dout,)."""
    M, Din = x2d.shape
    Dout = w.shape[1]
    vlim = _vmem_limit_bytes()
    if tile_m is None:
        tile_m = _default_tile()
    sub = _sublane(x2d.dtype)
    tm = min(tile_m, _round_up(M, sub))
    Mp = _round_up(M, tm)
    if Mp != M:
        x2d = jnp.pad(x2d, ((0, Mp - M), (0, 0)))
    b2d = b.reshape(1, Dout)
    itm = jnp.dtype(x2d.dtype).itemsize

    # Tile Dout only if the full weight would eat too much VMEM (v7x, big D).
    tn = Dout
    budget = vlim // 4
    while Din * tn * itm > budget and tn % 2 == 0 and (tn // 2) % 128 == 0:
        tn //= 2
    n_tiles = Dout // tn

    if n_tiles == 1 and Din * Dout * itm >= 4 * _MIB:
        # Weight index is constant over the grid -> single-buffer the resident
        # weight instead of the default 2-deep pipeline (halves its footprint).
        w_spec = _single_buffered_spec((Din, tn), lambda i, j: (0, j))
    else:
        w_spec = pl.BlockSpec((Din, tn), lambda i, j: (0, j))

    cost = pl.CostEstimate(
        flops=2 * Mp * Din * Dout,
        transcendentals=0,
        bytes_accessed=(Mp * Din * n_tiles + Din * Dout + Dout + Mp * Dout) * itm)

    out = pl.pallas_call(
        _linear_kernel,
        out_shape=jax.ShapeDtypeStruct((Mp, Dout), x2d.dtype),
        grid_spec=pltpu.PrefetchScalarGridSpec(
            num_scalar_prefetch=0,
            grid=(Mp // tm, n_tiles),
            in_specs=[
                pl.BlockSpec((tm, Din), lambda i, j: (i, 0)),   # activations
                w_spec,                                         # weight
                pl.BlockSpec((1, tn), lambda i, j: (0, j)),     # bias
            ],
            out_specs=pl.BlockSpec((tm, tn), lambda i, j: (i, j)),
        ),
        compiler_params=pltpu.CompilerParams(
            dimension_semantics=("parallel", "parallel"),
            vmem_limit_bytes=vlim),
        cost_estimate=cost,
    )(x2d, w, b2d)
    return out[:M]


# ------------------------ Flash attention kernels ---------------------------

def _flash_step(q_ref, k_ref, v_ref, msk_ref, o_ref, m_sc, l_sc, acc_sc, *,
                scale, k_axis, need_kpad, sk, tk):
    ki = pl.program_id(k_axis)

    @pl.when(ki == 0)
    def _():
        m_sc[...] = jnp.full(m_sc.shape, -jnp.inf, jnp.float32)
        l_sc[...] = jnp.zeros(l_sc.shape, jnp.float32)
        acc_sc[...] = jnp.zeros(acc_sc.shape, jnp.float32)

    # Native-dtype (e.g. bf16) MXU inputs, f32 accumulation only.  The
    # 1/sqrt(dk) scale is folded into q (tq x dk), not the (tq x tk) scores.
    q = q_ref[0] * scale
    s = jax.lax.dot_general(q, k_ref[0], (((1,), (1,)), ((), ())),
                            preferred_element_type=jnp.float32)
    if need_kpad:                 # static: only when Sk was padded w/o a mask
        col = ki * tk + jax.lax.broadcasted_iota(jnp.int32, s.shape, 1)
        s = jnp.where(col < sk, s, _NEG_INF)
    if msk_ref is not None:       # compact mask expanded to a bias in-kernel
        s = jnp.where(msk_ref[0] == 0, _NEG_INF, s)

    m_prev = m_sc[...]
    m_new = jnp.maximum(m_prev, jnp.max(s, axis=-1, keepdims=True))
    alpha = jnp.exp(m_prev - m_new)
    p = jnp.exp(s - m_new)
    l_sc[...] = alpha * l_sc[...] + jnp.sum(p, axis=-1, keepdims=True)
    acc_sc[...] = alpha * acc_sc[...] + jax.lax.dot_general(
        p.astype(v_ref.dtype), v_ref[0], (((1,), (0,)), ((), ())),
        preferred_element_type=jnp.float32)
    m_sc[...] = m_new

    @pl.when(ki == pl.num_programs(k_axis) - 1)
    def _():
        # Deferred normalization: one EUP reciprocal + a (tq x dk) multiply.
        inv = pl.reciprocal(l_sc[...], approx=True)
        o_ref[0] = (acc_sc[...] * inv).astype(o_ref.dtype)


def _flash_kernel(q_ref, k_ref, v_ref, o_ref, m_sc, l_sc, acc_sc, *,
                  scale, k_axis, need_kpad, sk, tk):
    _flash_step(q_ref, k_ref, v_ref, None, o_ref, m_sc, l_sc, acc_sc,
                scale=scale, k_axis=k_axis, need_kpad=need_kpad, sk=sk, tk=tk)


def _flash_kernel_masked(q_ref, k_ref, v_ref, msk_ref, o_ref, m_sc, l_sc,
                         acc_sc, *, scale, k_axis):
    _flash_step(q_ref, k_ref, v_ref, msk_ref, o_ref, m_sc, l_sc, acc_sc,
                scale=scale, k_axis=k_axis, need_kpad=False, sk=0, tk=1)


def _normalize_mask(mask, B, H, Sq, Sk, Sqp, Skp):
    """Compact int32 mask (no head broadcast in HBM): (lead, Sqp, Skp)."""
    m = jnp.asarray(mask)
    while m.ndim < 4:
        m = m[None]
    mb, mh = m.shape[0], m.shape[1]
    assert mb in (1, B) and mh in (1, H), "mask must broadcast over (B,H,Sq,Sk)"
    m = jnp.broadcast_to(m, (mb, mh, Sq, Sk))
    if mh == 1:
        m3 = m.reshape(mb, Sq, Sk)
        n_lead = mb                          # 1 or B
    else:                                    # rare: per-head mask
        m3 = jnp.broadcast_to(m, (B, H, Sq, Sk)).reshape(B * H, Sq, Sk)
        n_lead = B * H
    m3 = m3.astype(jnp.int32)
    if (Sqp, Skp) != (Sq, Sk):
        # zero padding == masked: also covers padded key columns
        m3 = jnp.pad(m3, ((0, 0), (0, Sqp - Sq), (0, Skp - Sk)))
    return m3, n_lead


def _attention(q_p, k_p, v_p, mask, *, B, Sq, Sk, num_heads, dk,
               tile_q=None, tile_k=None):
    """Flash SDPA over projected slabs; returns a (B*Sq, D) head-combined slab."""
    H = num_heads
    D = H * dk
    dtype = q_p.dtype
    itm = jnp.dtype(dtype).itemsize
    sub = _sublane(dtype)
    if tile_q is None:
        tile_q = _default_tile()
    if tile_k is None:
        tile_k = _default_tile()
    tq = min(tile_q, _round_up(Sq, sub))
    tk = min(tile_k, _round_up(Sk, sub))
    Sqp = _round_up(Sq, tq)
    Skp = _round_up(Sk, tk)
    scale = 1.0 / math.sqrt(dk)
    vlim = _vmem_limit_bytes()

    head_col = (dk % 128 == 0)
    if head_col:
        # Heads are lane-column blocks of the (B, S, D) slab: no split/combine
        # transposes (saves HBM round trips) and >=128-lane output stores.
        qh = q_p.reshape(B, Sq, D)
        kh = k_p.reshape(B, Sk, D)
        vh = v_p.reshape(B, Sk, D)
    else:
        # TODO(synk): dk < 128 forces a head split/combine transpose round-trip
        # and sub-128-lane (masked) output stores; accepted for small dk.
        def split(x, S):
            return (x.reshape(B, S, H, dk).transpose(0, 2, 1, 3)
                     .reshape(B * H, S, dk))
        qh, kh, vh = split(q_p, Sq), split(k_p, Sk), split(v_p, Sk)

    if Sqp != Sq:
        qh = jnp.pad(qh, ((0, 0), (0, Sqp - Sq), (0, 0)))
    if Skp != Sk:
        kh = jnp.pad(kh, ((0, 0), (0, Skp - Sk), (0, 0)))
        vh = jnp.pad(vh, ((0, 0), (0, Skp - Sk), (0, 0)))

    if head_col:
        grid = (B, H, Sqp // tq, Skp // tk)
        k_axis = 3
        q_spec = pl.BlockSpec((1, tq, dk), lambda b, h, i, j: (b, i, h))
        kv_spec = pl.BlockSpec((1, tk, dk), lambda b, h, i, j: (b, j, h))
        o_spec = pl.BlockSpec((1, tq, dk), lambda b, h, i, j: (b, i, h))
        out_shape = jax.ShapeDtypeStruct((B, Sqp, D), dtype)
        dims = ("parallel", "parallel", "parallel", "arbitrary")
    else:
        grid = (B * H, Sqp // tq, Skp // tk)
        k_axis = 2
        q_spec = pl.BlockSpec((1, tq, dk), lambda bh, i, j: (bh, i, 0))
        kv_spec = pl.BlockSpec((1, tk, dk), lambda bh, i, j: (bh, j, 0))
        o_spec = pl.BlockSpec((1, tq, dk), lambda bh, i, j: (bh, i, 0))
        out_shape = jax.ShapeDtypeStruct((B * H, Sqp, dk), dtype)
        dims = ("parallel", "parallel", "arbitrary")

    scratch = [pltpu.VMEM((tq, 1), jnp.float32),    # running max
               pltpu.VMEM((tq, 1), jnp.float32),    # running denominator
               pltpu.VMEM((tq, dk), jnp.float32)]   # f32 output accumulator
    cparams = pltpu.CompilerParams(dimension_semantics=dims,
                                   vmem_limit_bytes=vlim)
    flops = 4 * B * H * Sqp * Skp * dk
    trans = B * H * Sqp * Skp
    io_bytes = (qh.size + kh.size + vh.size + B * H * Sqp * dk) * itm

    if mask is None:
        kern = functools.partial(_flash_kernel, scale=scale, k_axis=k_axis,
                                 need_kpad=(Skp != Sk), sk=Sk, tk=tk)
        out = pl.pallas_call(
            kern, out_shape=out_shape,
            grid_spec=pltpu.PrefetchScalarGridSpec(
                num_scalar_prefetch=0, grid=grid,
                in_specs=[q_spec, kv_spec, kv_spec],
                out_specs=o_spec, scratch_shapes=scratch),
            compiler_params=cparams,
            cost_estimate=pl.CostEstimate(flops=flops, transcendentals=trans,
                                          bytes_accessed=io_bytes),
        )(qh, kh, vh)
    else:
        m3, n_lead = _normalize_mask(mask, B, H, Sq, Sk, Sqp, Skp)
        if head_col:
            if n_lead == 1:
                m_map = lambda b, h, i, j: (0, i, j)
            elif n_lead == B:
                m_map = lambda b, h, i, j: (b, i, j)
            else:
                m_map = lambda b, h, i, j: (b * H + h, i, j)
        else:
            if n_lead == 1:
                m_map = lambda bh, i, j: (0, i, j)
            elif n_lead == B:
                m_map = lambda bh, i, j: (bh // H, i, j)
            else:
                m_map = lambda bh, i, j: (bh, i, j)
        m_spec = pl.BlockSpec((1, tq, tk), m_map)
        kern = functools.partial(_flash_kernel_masked, scale=scale, k_axis=k_axis)
        out = pl.pallas_call(
            kern, out_shape=out_shape,
            grid_spec=pltpu.PrefetchScalarGridSpec(
                num_scalar_prefetch=0, grid=grid,
                in_specs=[q_spec, kv_spec, kv_spec, m_spec],
                out_specs=o_spec, scratch_shapes=scratch),
            compiler_params=cparams,
            cost_estimate=pl.CostEstimate(flops=flops, transcendentals=trans,
                                          bytes_accessed=io_bytes + m3.size * 4),
        )(qh, kh, vh, m3)

    if head_col:
        return out[:, :Sq, :].reshape(B * Sq, D)
    return (out[:, :Sq, :].reshape(B, H, Sq, dk)
            .transpose(0, 2, 1, 3).reshape(B * Sq, D))


# ------------------------------ MHA wrapper ----------------------------------

def multi_head_attention(q, k, v, params, num_heads, mask=None, *,
                         tile_m=None, tile_q=None, tile_k=None,
                         compute_dtype=jnp.bfloat16):
    """q:(B,Sq,D), k/v:(B,Sk,D) -> (B,Sq,D) in the input dtype.

    compute_dtype=bf16 (default) feeds the MXU its native narrow dtype with
    f32 accumulation; pass None to compute in the input dtype.
    """
    wq, bq, wk, bk, wv, bv, wo, bo = params
    B, Sq, D = q.shape
    Sk = k.shape[1]
    assert D % num_heads == 0, "d_model must be divisible by num_heads"
    dk = D // num_heads
    out_dtype = q.dtype

    if compute_dtype is not None:
        q, k, v = (t.astype(compute_dtype) for t in (q, k, v))
        wq, wk, wv, wo = (t.astype(compute_dtype) for t in (wq, wk, wv, wo))
        bq, bk, bv, bo = (t.astype(compute_dtype) for t in (bq, bk, bv, bo))

    # Q/K/V projections on lane-dense (M, d_model) slabs.
    q_p = _linear(q.reshape(B * Sq, D), wq, bq, tile_m=tile_m)
    k_p = _linear(k.reshape(B * Sk, D), wk, bk, tile_m=tile_m)
    v_p = _linear(v.reshape(B * Sk, D), wv, bv, tile_m=tile_m)

    attn = _attention(q_p, k_p, v_p, mask, B=B, Sq=Sq, Sk=Sk,
                      num_heads=num_heads, dk=dk,
                      tile_q=tile_q, tile_k=tile_k)       # (B*Sq, D)

    out = _linear(attn, wo, bo, tile_m=tile_m)
    return out.reshape(B, Sq, D).astype(out_dtype)


# ----------------------------- Init & reference ------------------------------

def init_params(key, d_model, dtype=jnp.float32):
    """Mimics nn.Linear default init; weights stored pre-transposed (in, out)."""
    keys = jax.random.split(key, 8)
    bound = 1.0 / math.sqrt(d_model)

    def w(kk):
        return jax.random.uniform(kk, (d_model, d_model), dtype, -bound, bound)

    def b(kk):
        return jax.random.uniform(kk, (d_model,), dtype, -bound, bound)

    return (w(keys[0]), b(keys[1]), w(keys[2]), b(keys[3]),
            w(keys[4]), b(keys[5]), w(keys[6]), b(keys[7]))


def reference_mha(q, k, v, params, num_heads, mask=None):
    P = jax.lax.Precision.HIGHEST
    wq, bq, wk, bk, wv, bv, wo, bo = params
    B, Sq, D = q.shape
    Sk = k.shape[1]
    dk = D // num_heads

    def proj(x, w, b):
        return jnp.einsum('bsd,de->bse', x, w, precision=P) + b

    def split(x, S):
        return x.reshape(B, S, num_heads, dk).transpose(0, 2, 1, 3)

    Qp = split(proj(q, wq, bq), Sq)
    Kp = split(proj(k, wk, bk), Sk)
    Vp = split(proj(v, wv, bv), Sk)
    scores = jnp.einsum('bhqd,bhkd->bhqk', Qp, Kp, precision=P) / math.sqrt(dk)
    if mask is not None:
        m = jnp.asarray(mask)
        while m.ndim < 4:
            m = m[None]
        scores = jnp.where(m == 0, -1e9, scores)   # torch masked_fill semantics
    probs = jax.nn.softmax(scores, axis=-1)
    out = jnp.einsum('bhqk,bhkd->bhqd', probs, Vp, precision=P)
    out = out.transpose(0, 2, 1, 3).reshape(B, Sq, D)
    return jnp.einsum('bsd,de->bse', out, wo, precision=P) + bo


if __name__ == "__main__":
    batch, seq, d_model, num_heads = 2, 8, 32, 4
    key = jax.random.PRNGKey(0)
    kq, kk, kv, kp = jax.random.split(key, 4)
    Q = jax.random.normal(kq, (batch, seq, d_model), jnp.float32)
    K = jax.random.normal(kk, (batch, seq, d_model), jnp.float32)
    V = jax.random.normal(kv, (batch, seq, d_model), jnp.float32)
    params = init_params(kp, d_model)
    causal = jnp.tril(jnp.ones((seq, seq), jnp.int32))[None, None, :, :]

    ref = reference_mha(Q, K, V, params, num_heads)
    ref_m = reference_mha(Q, K, V, params, num_heads, mask=causal)

    # f32 compute path (tight tolerance; only approx-reciprocal differs)
    out = jax.block_until_ready(
        multi_head_attention(Q, K, V, params, num_heads, compute_dtype=None))
    assert out.shape == (batch, seq, d_model)
    err = float(jnp.max(jnp.abs(out - ref)))
    assert jnp.allclose(out, ref, atol=1e-2, rtol=1e-2), f"f32 max err {err}"

    out_m = jax.block_until_ready(
        multi_head_attention(Q, K, V, params, num_heads, mask=causal,
                             compute_dtype=None))
    err_m = float(jnp.max(jnp.abs(out_m - ref_m)))
    assert jnp.allclose(out_m, ref_m, atol=1e-2, rtol=1e-2), f"f32 mask err {err_m}"

    # default bf16 compute path (looser tolerance vs the f32 reference)
    out_bf = jax.block_until_ready(
        multi_head_attention(Q, K, V, params, num_heads))
    err_bf = float(jnp.max(jnp.abs(out_bf - ref)))
    assert jnp.allclose(out_bf, ref, atol=7e-2, rtol=7e-2), f"bf16 max err {err_bf}"

    out_bfm = jax.block_until_ready(
        multi_head_attention(Q, K, V, params, num_heads, mask=causal))
    err_bfm = float(jnp.max(jnp.abs(out_bfm - ref_m)))
    assert jnp.allclose(out_bfm, ref_m, atol=7e-2, rtol=7e-2), f"bf16 mask err {err_bfm}"

    print("KERNEL_OK")
</pallas_src>

<mosaic_0001>
module attributes {stable_mosaic.version = 11 : i64} {
  func.func @_linear_kernel(%arg0: i32, %arg1: i32, %arg2: memref<16x32xf32, #tpu.memory_space<vmem>>, %arg3: memref<32x32xf32, #tpu.memory_space<vmem>>, %arg4: memref<1x32xf32, #tpu.memory_space<vmem>>, %arg5: memref<16x32xf32, #tpu.memory_space<vmem>>) attributes {dimension_semantics = [#tpu.dimension_semantics<parallel>, #tpu.dimension_semantics<parallel>], iteration_bounds = array<i64: 1, 1>, scalar_prefetch = 0 : i64, scratch_operands = 0 : i64, tpu.core_type = #tpu.core_type<tc>, window_params = [{transform_indices = @transform_0, window_bounds = array<i64: 16, 32>}, {transform_indices = @transform_1, window_bounds = array<i64: 32, 32>}, {transform_indices = @transform_2, window_bounds = array<i64: 1, 32>}, {transform_indices = @transform_3, window_bounds = array<i64: 16, 32>}]} {
    %c0 = arith.constant 0 : index
    %c0_0 = arith.constant 0 : index
    %0 = vector.load %arg2[%c0, %c0_0] : memref<16x32xf32, #tpu.memory_space<vmem>>, vector<16x32xf32>
    %c0_1 = arith.constant 0 : index
    %c0_2 = arith.constant 0 : index
    %1 = vector.load %arg3[%c0_1, %c0_2] : memref<32x32xf32, #tpu.memory_space<vmem>>, vector<32x32xf32>
    %cst = arith.constant dense<0.000000e+00> : vector<16x32xf32>
    %2 = tpu.matmul %0, %1, %cst {dimension_numbers = #tpu.dot_dimension_numbers<[1], [0], [0], [1], [0, 0, 1, 1], [], []>} : vector<16x32xf32>, vector<32x32xf32>, vector<16x32xf32> -> vector<16x32xf32>
    %c0_3 = arith.constant 0 : index
    %c0_4 = arith.constant 0 : index
    %3 = vector.load %arg4[%c0_3, %c0_4] : memref<1x32xf32, #tpu.memory_space<vmem>>, vector<1x32xf32>
    %4 = vector.broadcast %3 : vector<1x32xf32> to vector<16x32xf32>
    %5 = arith.addf %2, %4 : vector<16x32xf32>
    %c0_5 = arith.constant 0 : index
    %c0_6 = arith.constant 0 : index
    %6 = vector.load %arg5[%c0_5, %c0_6] : memref<16x32xf32, #tpu.memory_space<vmem>>, vector<16x32xf32>
    tpu.vector_store %arg5[%c0_5, %c0_6], %5 {strides = array<i32>} : memref<16x32xf32, #tpu.memory_space<vmem>>, vector<16x32xf32>,
    return
  }
  func.func @transform_0(%arg0: i32, %arg1: i32) -> (i32, i32) {
    %c0_i32 = arith.constant 0 : i32
    %c0_i32_0 = arith.constant 0 : i32
    return %arg0, %c0_i32 : i32, i32
  }
  func.func @transform_1(%arg0: i32, %arg1: i32) -> (i32, i32) {
    %c0_i32 = arith.constant 0 : i32
    %c0_i32_0 = arith.constant 0 : i32
    return %c0_i32, %arg1 : i32, i32
  }
  func.func @transform_2(%arg0: i32, %arg1: i32) -> (i32, i32) {
    %c0_i32 = arith.constant 0 : i32
    %c0_i32_0 = arith.constant 0 : i32
    return %c0_i32, %arg1 : i32, i32
  }
  func.func @transform_3(%arg0: i32, %arg1: i32) -> (i32, i32) {
    %c0_i32 = arith.constant 0 : i32
    return %arg0, %arg1 : i32, i32
  }
}

</mosaic_0001>

<llo_original>
// kernel: tpu_custom_call.1
$region0: #{tpu_custom_call.1}
  #allocation0 [shape = 'u32[]', space=smem, size = 0x4, offset = 0x4, fixed_abs, tag = 'smem constant byte address 0x4 - core index']
  #allocation1 [shape = 'u32[144,128]{1,0:T(1,128)}', space=vmem, size = 0x12000, scoped, tag = 'internal scratch']
  %s0 = inlined_call_operand.hbm [shape: f32[16,32], index: 0, kind: input, shape index: {}]
  %s1 = inlined_call_operand.hbm [shape: f32[32,32], index: 1, kind: input, shape index: {}]
  %s2 = inlined_call_operand.vmem [shape: f32[1,32], index: 2, kind: input, shape index: {}]
  %s3 = inlined_call_operand.hbm [shape: f32[16,32], index: 3, kind: output, shape index: {}]
  %s4 = sld [smem:[#allocation0]]
  $region30: #{tpu_custom_call.1} parent=0
    _
  %s6 = ssub.s32 1, %s4
  %s7 = scalar_select 0, %s6, %s4
  $region1: #{tpu_custom_call.1} parent=0
    #allocation2 [shape = 'u8[8192]{0}', space=vmem, size = 0x2000, scoped, tag = 'input window, operand 0, single buffered']
    #allocation3 [shape = 's32[1]{0}', space=sflag, size = 0x4, scoped, tag = 'scoped memory for tpu_custom_call.1']
    #allocation4 [shape = 's32[1]{0}', space=sflag, size = 0x4, scoped, tag = 'scoped memory for tpu_custom_call.1']
    #allocation5 [shape = 'u8[16384]{0}', space=vmem, size = 0x4000, scoped, tag = 'input window, operand 1, single buffered']
    #allocation6 [shape = 's32[1]{0}', space=sflag, size = 0x4, scoped, tag = 'scoped memory for tpu_custom_call.1']
    #allocation7 [shape = 'u8[8192]{0}', space=vmem, size = 0x2000, scoped, tag = 'output window, operand 0, single buffered']
    %8 = vsyncpa [#allocation3], 0
    %9 = vsyncpa [#allocation6], 0
    %10 = vsyncpa [#allocation4], 0
    // Predicated region
    $region2: #{tpu_custom_call.1} parent=1 // pred_check
      _
    $region3: #{tpu_custom_call.1} parent=1 // pred_check_branch
      %12 = sbr.rel (0) target = $region5
    $region4: #{tpu_custom_call.1} parent=1 // pred_region
      %s14 = ssub.s32 256, 256
      %15 = vsyncadd [#allocation3], %s14
      %s16 = sshll.u32 [#allocation2], 4
      %s17 = int_to_ptr.vmem [resolvable:$true] %s16
      %22 = dma.hbm_to_vmem [thread:$0]  %s0, 256, %s17, [#allocation3], 128, 128, 8
    $region5: #{tpu_custom_call.1} parent=1 // pred_fallthru
      _
    // Predicated region
    $region6: #{tpu_custom_call.1} parent=1 // pred_check
      _
    $region7: #{tpu_custom_call.1} parent=1 // pred_check_branch
      %24 = sbr.rel (0) target = $region9
    $region8: #{tpu_custom_call.1} parent=1 // pred_region
      %s26 = ssub.s32 512, 512
      %27 = vsyncadd [#allocation6], %s26
      %s28 = sshll.u32 [#allocation5], 4
      %s29 = int_to_ptr.vmem [resolvable:$true] %s28
      %34 = dma.hbm_to_vmem [thread:$0]  %s1, 512, %s29, [#allocation6], 128, 128, 8
    $region9: #{tpu_custom_call.1} parent=1 // pred_fallthru
      _
    // Predicated region
    $region10: #{tpu_custom_call.1} parent=1 // pred_check
      _
    $region11: #{tpu_custom_call.1} parent=1 // pred_check_branch
      %36 = sbr.rel (0) target = $region13
    $region12: #{tpu_custom_call.1} parent=1 // pred_region
      _
    $region13: #{tpu_custom_call.1} parent=1 // pred_fallthru
      _
    // Predicated region
    $region14: #{tpu_custom_call.1} parent=1 // pred_check
      _
    $region15: #{tpu_custom_call.1} parent=1 // pred_check_branch
      %38 = sbr.rel (0) target = $region17
    $region16: #{tpu_custom_call.1} parent=1 // pred_region
      %39 = dma.done [#allocation3], 256
    $region17: #{tpu_custom_call.1} parent=1 // pred_fallthru
      _
    // Predicated region
    $region18: #{tpu_custom_call.1} parent=1 // pred_check
      _
    $region19: #{tpu_custom_call.1} parent=1 // pred_check_branch
      %41 = sbr.rel (0) target = $region21
    $region20: #{tpu_custom_call.1} parent=1 // pred_region
      %42 = dma.done [#allocation6], 512
    $region21: #{tpu_custom_call.1} parent=1 // pred_fallthru
      _
    %v43 = vld [vmem:[#allocation2] sm:$0xff]
    %v44 = vld [vmem:[#allocation2 + $0x8] sm:$0xff]
    %v45 = vld [vmem:[#allocation5] sm:$0xff]
    %v46 = vld [vmem:[#allocation5 + $0x8] sm:$0xff]
    %v47 = vld [vmem:[#allocation5 + $0x10] sm:$0xff]
    %v48 = vld [vmem:[#allocation5 + $0x18] sm:$0xff]
    %v49 = vld [vmem:[%s2] sm:$0x1]
    %v51 = vlaneseq
    %v52 = vshrl.u32 %v51, 7
    %v53 = vsub.s32 0, %v52
    %v54 = vrot.slane %v49, %v53
    %vm56 = vcmask 261120
    %v58 = vsel %vm56, %v43, 0
    %v61 = vsel %vm56, %v44, 0
    %63 = vmatprep.subr.mxu0 0.0
    %64 = vmatpush1.msra.mxu0 %v45
    %65 = vmatprep.subr.mxu0 0.0
    %66 = vmatpush1.msra.mxu0 %v46
    %67 = vmatprep.subr.mxu0 0.0
    %68 = vmatpush1.msra.mxu0 %v47
    %69 = vmatprep.subr.mxu0 0.0
    %70 = vmatpush1.msra.mxu0 %v48
    %71 = vmatprep.subr.mxu0 0.0
    %72 = vmatpush1.msra.mxu0 0.0
    %73 = vmatprep.subr.mxu0 0.0
    %74 = vmatpush1.msra.mxu0 0.0
    %75 = vmatprep.subr.mxu0 0.0
    %76 = vmatpush1.msra.mxu0 0.0
    %77 = vmatprep.subr.mxu0 0.0
    %78 = vmatpush1.msra.mxu0 0.0
    %79 = vmatprep.subr.mxu0 0.0
    %80 = vmatpush1.msra.mxu0 0.0
    %81 = vmatprep.subr.mxu0 0.0
    %82 = vmatpush1.msra.mxu0 0.0
    %83 = vmatprep.subr.mxu0 0.0
    %84 = vmatpush1.msra.mxu0 0.0
    %85 = vmatprep.subr.mxu0 0.0
    %86 = vmatpush1.msra.mxu0 0.0
    %87 = vmatprep.subr.mxu0 0.0
    %88 = vmatpush1.msra.mxu0 0.0
    %89 = vmatprep.subr.mxu0 0.0
    %90 = vmatpush1.msra.mxu0 0.0
    %91 = vmatprep.subr.mxu0 0.0
    %92 = vmatpush1.msra.mxu0 0.0
    %93 = vmatprep.subr.mxu0 0.0
    %94 = vmatpush1.msra.mxu0 0.0
    %95 = vmatprep.subr.mxu0 0.0
    %96 = vmatpush1.msra.mxu0 0.0
    %97 = vmatprep.subr.mxu0 0.0
    %98 = vmatpush1.msra.mxu0 0.0
    %99 = vmatprep.subr.mxu0 0.0
    %100 = vmatpush1.msra.mxu0 0.0
    %101 = vmatprep.subr.mxu0 0.0
    %102 = vmatpush1.msra.mxu0 0.0
    %103 = vmatprep.subr.mxu0 0.0
    %104 = vmatpush1.msra.mxu0 0.0
    %105 = vmatprep.subr.mxu0 0.0
    %106 = vmatpush1.msra.mxu0 0.0
    %107 = vmatprep.subr.mxu0 0.0
    %108 = vmatpush1.msra.mxu0 0.0
    %109 = vmatprep.subr.mxu0 0.0
    %110 = vmatpush1.msra.mxu0 0.0
    %111 = vmatprep.subr.mxu0 0.0
    %112 = vmatpush1.msra.mxu0 0.0
    %113 = vmatprep.subr.mxu0 0.0
    %114 = vmatpush1.msra.mxu0 0.0
    %115 = vmatprep.subr.mxu0 0.0
    %116 = vmatpush1.msra.mxu0 0.0
    %117 = vmatprep.subr.mxu0 0.0
    %118 = vmatpush1.msra.mxu0 0.0
    %119 = vmatprep.subr.mxu0 0.0
    %120 = vmatpush1.msra.mxu0 0.0
    %121 = vmatprep.subr.mxu0 0.0
    %122 = vmatpush1.msra.mxu0 0.0
    %123 = vmatprep.subr.mxu0 0.0
    %124 = vmatpush1.msra.mxu0 0.0
    %125 = vmatprep.subr.mxu0 0.0
    %126 = vmatpush1.msra.mxu0 0.0
    %127 = vmatprep.mubr.f32.mxu0 0.0
    %128 = vmatmul.mubr.f32.gmra.mrb[0].mxu0 %v58
    %v129 = vpop.f32.mrb[0].mxu0
    %v130 = vadd.f32 %v54, %v129
    %v131 = vpop.f32.mrb[0].mxu0
    %132 = vmatprep.mubr.f32.mxu0 0.0
    %133 = vmatmul.mubr.f32.gmra.mrb[0].mxu0 %v61
    %v134 = vpop.f32.mrb[0].mxu0
    %v135 = vadd.f32 %v54, %v134
    %v136 = vpop.f32.mrb[0].mxu0
    %137 = vdwg.mxu0
    %138 = vst.msk [vmem:[#allocation7] sm:$0xff] %vm56, %v130
    %139 = vst.msk [vmem:[#allocation7 + $0x8] sm:$0xff] %vm56, %v135
    // Predicated region
    $region22: #{tpu_custom_call.1} parent=1 // pred_check
      _
    $region23: #{tpu_custom_call.1} parent=1 // pred_check_branch
      %141 = sbr.rel (0) target = $region25
    $region24: #{tpu_custom_call.1} parent=1 // pred_region
      %s143 = ssub.s32 256, 256
      %144 = vsyncadd [#allocation4], %s143
      %s145 = sshll.u32 [#allocation7], 4
      %s146 = int_to_ptr.vmem [resolvable:$true] %s145
      %151 = dma.vmem_to_hbm [thread:$0]  %s146, 256, %s3, [#allocation4], 128, 128, 8
    $region25: #{tpu_custom_call.1} parent=1 // pred_fallthru
      _
    // Predicated region
    $region26: #{tpu_custom_call.1} parent=1 // pred_check
      _
    $region27: #{tpu_custom_call.1} parent=1 // pred_check_branch
      %153 = sbr.rel (0) target = $region29
    $region28: #{tpu_custom_call.1} parent=1 // pred_region
      %154 = dma.done [#allocation4], 256
    $region29: #{tpu_custom_call.1} parent=1 // pred_fallthru
      _
    %155 = vsyncpa [#allocation3], 1
    %156 = vsyncpa [#allocation6], 1
    %157 = vsyncpa [#allocation4], 1

</llo_original>
